<compile_context>
chip_gen: v6e
topology: v6e:2x2x1
jax: 0.10.0
libtpu: 0.0.40
codegen_flags: <defaults>
</compile_context>

<pallas_src>
import jax
import jax.numpy as jnp
from jax import lax
from jax.experimental import pallas as pl
from jax.experimental.pallas import tpu as pltpu


def _round_up(x, m):
    return ((x + m - 1) // m) * m


def _pick_tile(size, max_tile, align):
    """Tile size (multiple of `align`, <= ~max_tile) and the padded extent."""
    t = _round_up(min(max_tile, size), align)
    padded = _round_up(size, t)
    return t, padded


def _pick_tm(n, tm_max):
    """Row tile: multiple of 8, and >=2 grid steps when n allows (v7x megacore)."""
    tm = _round_up(min(tm_max, n), 8)
    if n > 8 and _round_up(n, tm) // tm < 2:
        tm = _round_up((n + 1) // 2, 8)
    return max(tm, 8)


# ----------------------------------------------------------------------------
# Kernels
# ----------------------------------------------------------------------------
def rp_encode_kernel(x_ref, w_ref, b_ref, o_ref):
    """out_tile = tanh(x_tile @ w_tile + b_tile)   (binarize_soft of Linear)."""
    h = jnp.dot(x_ref[...], w_ref[...], preferred_element_type=jnp.float32)
    o_ref[...] = jnp.tanh(h + b_ref[...]).astype(o_ref.dtype)


def fused_classify_kernel(x_ref, w_ref, b_ref, chv_ref, o_ref, acc_ref):
    """Fused encode + similarity, accumulated over D chunks.

    For D-chunk k:  acc += tanh(x @ W[:, k] + b[k]) @ chv_scaled[:, k].T
    chv_scaled = where(class_hvs > 0, 1/D, -1/D) is precomputed in the wrapper,
    so the final accumulator IS the similarity; store it on the last k step.
    The (TM, TD) encoding chunk never leaves vregs/VMEM.
    """
    k = pl.program_id(1)

    @pl.when(k == 0)
    def _():
        acc_ref[...] = jnp.zeros_like(acc_ref)

    h = jnp.dot(x_ref[...], w_ref[...], preferred_element_type=jnp.float32)
    enc = jnp.tanh(h + b_ref[...])

    # Contract the last axis of BOTH operands -> MXU-friendly, no transpose.
    acc_ref[...] += lax.dot_general(
        enc.astype(chv_ref.dtype),
        chv_ref[...],
        dimension_numbers=(((1,), (1,)), ((), ())),
        preferred_element_type=jnp.float32,
    )

    @pl.when(k == pl.num_programs(1) - 1)
    def _():
        o_ref[...] = acc_ref[...]


# ----------------------------------------------------------------------------
# Wrappers
# ----------------------------------------------------------------------------
_VMEM_LIMIT = 48 * 1024 * 1024  # fits v7x (64 MiB physical), > v5e default 16 MiB


def hdc_encode(x, w_t, b, *, compute_dtype=jnp.bfloat16, out_dtype=jnp.bfloat16,
               tm=512, tn=1024):
    """x: (N, dim), w_t: (dim, D), b: (D,) -> (N, D) in out_dtype."""
    N, dim = x.shape
    D = w_t.shape[1]

    TM = _pick_tm(N, tm)
    Np = _round_up(N, TM)
    TN, Dp = _pick_tile(D, tn, 128)

    xc = x.astype(compute_dtype)
    if Np != N:
        xc = jnp.pad(xc, ((0, Np - N), (0, 0)))
    wc = w_t.astype(compute_dtype)
    bc = jnp.reshape(b, (1, D)).astype(jnp.float32)
    if Dp != D:
        wc = jnp.pad(wc, ((0, 0), (0, Dp - D)))
        bc = jnp.pad(bc, ((0, 0), (0, Dp - D)))

    out = pl.pallas_call(
        rp_encode_kernel,
        out_shape=jax.ShapeDtypeStruct((Np, Dp), out_dtype),
        grid_spec=pltpu.PrefetchScalarGridSpec(
            num_scalar_prefetch=0,
            # Row axis innermost: the W / bias block index is constant across
            # inner steps, so each (dim, TN) weight tile is DMA'd once per
            # outer step instead of once per row tile (W is the big operand
            # in HDC: small dim, huge D).
            grid=(Dp // TN, Np // TM),
            in_specs=[
                pl.BlockSpec((TM, dim), lambda j, i: (i, 0)),
                pl.BlockSpec((dim, TN), lambda j, i: (0, j)),
                pl.BlockSpec((1, TN), lambda j, i: (0, j)),
            ],
            out_specs=pl.BlockSpec((TM, TN), lambda j, i: (i, j)),
        ),
        compiler_params=pltpu.CompilerParams(
            dimension_semantics=("parallel", "parallel"),
            vmem_limit_bytes=_VMEM_LIMIT),
    )(xc, wc, bc)

    if Np != N or Dp != D:
        out = out[:N, :D]
    return out


def hdc_classify(x, w_t, b, class_hvs, *, compute_dtype=jnp.bfloat16,
                 tm=256, td=512):
    """Fused encode + similarity: (N, dim) -> (N, C) float32."""
    N, dim = x.shape
    D = w_t.shape[1]
    C = class_hvs.shape[0]

    TM = _pick_tm(N, tm)
    Np = _round_up(N, TM)
    TD, Dp = _pick_tile(D, td, 128)
    CP = _round_up(max(C, 1), 128)  # lane-dense, unmasked output stores

    xc = x.astype(compute_dtype)
    if Np != N:
        xc = jnp.pad(xc, ((0, Np - N), (0, 0)))
    wc = w_t.astype(compute_dtype)
    bc = jnp.reshape(b, (1, D)).astype(jnp.float32)

    # Pre-binarize + pre-scale the class HVs ONCE (loop-invariant work moved
    # out of the kernel): binarize_hard with the 1/D fold, in bf16.
    # (0 maps to -1/D, matching torch.where(x > 0, 1.0, -1.0) / D.)
    inv_d = 1.0 / D  # true D, not the padded one
    chv = jnp.where(class_hvs > 0, inv_d, -inv_d).astype(compute_dtype)

    if Dp != D:
        # Zero-padded D columns: W/bias pads give tanh(0)=0 and the chv pad is
        # 0, so padded columns contribute nothing to the accumulator.
        wc = jnp.pad(wc, ((0, 0), (0, Dp - D)))
        bc = jnp.pad(bc, ((0, 0), (0, Dp - D)))
        chv = jnp.pad(chv, ((0, 0), (0, Dp - D)))
    if CP != C:
        chv = jnp.pad(chv, ((0, CP - C), (0, 0)))  # padded classes sliced off

    out = pl.pallas_call(
        fused_classify_kernel,
        out_shape=jax.ShapeDtypeStruct((Np, CP), jnp.float32),
        grid_spec=pltpu.PrefetchScalarGridSpec(
            num_scalar_prefetch=0,
            # D-reduction axis last ("arbitrary"); VMEM usage bounded in D.
            grid=(Np // TM, Dp // TD),
            in_specs=[
                pl.BlockSpec((TM, dim), lambda i, k: (i, 0)),
                pl.BlockSpec((dim, TD), lambda i, k: (0, k)),
                pl.BlockSpec((1, TD), lambda i, k: (0, k)),
                pl.BlockSpec((CP, TD), lambda i, k: (0, k)),
            ],
            out_specs=pl.BlockSpec((TM, CP), lambda i, k: (i, 0)),
            scratch_shapes=[pltpu.VMEM((TM, CP), jnp.float32)],
        ),
        compiler_params=pltpu.CompilerParams(
            dimension_semantics=("parallel", "arbitrary"),
            vmem_limit_bytes=_VMEM_LIMIT),
    )(xc, wc, bc, chv)
    return out[:N, :C]


def hdc_forward(x, params, embedding=True, *, compute_dtype=jnp.bfloat16,
                out_dtype=jnp.bfloat16, tm_enc=512, tn_enc=1024,
                tm_cls=256, td_cls=512):
    """Forward pass of HDC (enc_type='RP', binary=True)."""
    if embedding:
        return hdc_encode(x, params["w_t"], params["b"],
                          compute_dtype=compute_dtype, out_dtype=out_dtype,
                          tm=tm_enc, tn=tn_enc)
    return hdc_classify(x, params["w_t"], params["b"], params["class_hvs"],
                        compute_dtype=compute_dtype, tm=tm_cls, td=td_cls)


# ----------------------------------------------------------------------------
# References for verification
# ----------------------------------------------------------------------------
def hdc_forward_ref_f32(x, params, embedding=True):
    """Pure-f32 spec reference (matches the PyTorch module exactly)."""
    enc = jnp.tanh(x @ params["w_t"] + jnp.reshape(params["b"], (1, -1)))
    if embedding:
        return enc
    chv = params["class_hvs"]
    chv_bin = jnp.where(chv > 0, 1.0, -1.0)
    return enc @ chv_bin.T / chv.shape[1]


def hdc_forward_ref_matched(x, params, embedding=True,
                            compute_dtype=jnp.bfloat16,
                            out_dtype=jnp.bfloat16):
    """Reference with the same bf16 casts as the kernels (tight check)."""
    xc = x.astype(compute_dtype)
    wc = params["w_t"].astype(compute_dtype)
    h = jnp.dot(xc, wc, preferred_element_type=jnp.float32)
    enc = jnp.tanh(h + jnp.reshape(params["b"], (1, -1)).astype(jnp.float32))
    if embedding:
        return enc.astype(out_dtype).astype(jnp.float32)
    chv = params["class_hvs"]
    inv_d = 1.0 / chv.shape[1]
    chv_s = jnp.where(chv > 0, inv_d, -inv_d).astype(compute_dtype)
    return lax.dot_general(enc.astype(compute_dtype), chv_s,
                           dimension_numbers=(((1,), (1,)), ((), ())),
                           preferred_element_type=jnp.float32)


# ----------------------------------------------------------------------------
# Main
# ----------------------------------------------------------------------------
def _make_params(key, dim, D, num_classes):
    k_w, k_b, k_c = jax.random.split(key, 3)
    bound = 1.0 / jnp.sqrt(dim)
    w = jax.random.uniform(k_w, (D, dim), jnp.float32, -bound, bound)
    b = jax.random.uniform(k_b, (D,), jnp.float32, -bound, bound)
    # class_hvs is zeros in __init__; synthetic random values so the
    # similarity path is non-trivial (it would be populated by init_class).
    class_hvs = jax.random.normal(k_c, (num_classes, D), dtype=jnp.float32)
    return {"w_t": jnp.transpose(w), "b": b, "class_hvs": class_hvs}
    # TODO(synk): init_class / HD_train_step are sequential, data-dependent
    # training loops and are not part of forward(); not implemented here.


def _check(out, ref_matched, ref_f32, atol_tight, atol_loose):
    out = jnp.asarray(out, jnp.float32)
    assert out.shape == ref_f32.shape, (out.shape, ref_f32.shape)
    err_t = float(jnp.max(jnp.abs(out - jnp.asarray(ref_matched, jnp.float32))))
    err_l = float(jnp.max(jnp.abs(out - jnp.asarray(ref_f32, jnp.float32))))
    assert err_t <= atol_tight, ("tight", err_t)
    assert err_l <= atol_loose, ("loose", err_l)


if __name__ == "__main__":
    key = jax.random.PRNGKey(0)

    # --- small case: dim=32 features, D=256 hypervector dim, 10 classes ---
    N, dim, D, num_classes = 8, 32, 256, 10
    k_x, k_p = jax.random.split(key)
    x = jax.random.normal(k_x, (N, dim), dtype=jnp.float32)
    params = _make_params(k_p, dim, D, num_classes)

    out_emb = jax.block_until_ready(hdc_forward(x, params, embedding=True))
    _check(out_emb,
           hdc_forward_ref_matched(x, params, embedding=True),
           hdc_forward_ref_f32(x, params, embedding=True),
           atol_tight=1e-2, atol_loose=6e-2)

    out_sim = jax.block_until_ready(hdc_forward(x, params, embedding=False))
    _check(out_sim,
           hdc_forward_ref_matched(x, params, embedding=False),
           hdc_forward_ref_f32(x, params, embedding=False),
           atol_tight=2e-3, atol_loose=1.5e-2)

    # --- larger case exercising multi-step grids on every axis ---
    N2, dim2, D2, C2 = 384, 32, 512, 10
    k_x2, k_p2 = jax.random.split(jax.random.PRNGKey(1))
    x2 = jax.random.normal(k_x2, (N2, dim2), dtype=jnp.float32)
    params2 = _make_params(k_p2, dim2, D2, C2)

    out_emb2 = jax.block_until_ready(
        hdc_encode(x2, params2["w_t"], params2["b"], tm=128, tn=256))
    _check(out_emb2,
           hdc_forward_ref_matched(x2, params2, embedding=True),
           hdc_forward_ref_f32(x2, params2, embedding=True),
           atol_tight=1e-2, atol_loose=6e-2)

    out_sim2 = jax.block_until_ready(
        hdc_classify(x2, params2["w_t"], params2["b"], params2["class_hvs"],
                     tm=128, td=256))  # td=256 -> 2 accumulation steps over D
    _check(out_sim2,
           hdc_forward_ref_matched(x2, params2, embedding=False),
           hdc_forward_ref_f32(x2, params2, embedding=False),
           atol_tight=2e-3, atol_loose=1.5e-2)

    # --- awkward sizes: exercises row / D / class padding paths ---
    N3, dim3, D3, C3 = 10, 32, 200, 5
    k_x3, k_p3 = jax.random.split(jax.random.PRNGKey(2))
    x3 = jax.random.normal(k_x3, (N3, dim3), dtype=jnp.float32)
    params3 = _make_params(k_p3, dim3, D3, C3)

    out_emb3 = jax.block_until_ready(hdc_forward(x3, params3, embedding=True))
    _check(out_emb3,
           hdc_forward_ref_matched(x3, params3, embedding=True),
           hdc_forward_ref_f32(x3, params3, embedding=True),
           atol_tight=1e-2, atol_loose=6e-2)

    out_sim3 = jax.block_until_ready(hdc_forward(x3, params3, embedding=False))
    _check(out_sim3,
           hdc_forward_ref_matched(x3, params3, embedding=False),
           hdc_forward_ref_f32(x3, params3, embedding=False),
           atol_tight=2e-3, atol_loose=1.5e-2)

    print("KERNEL_OK")
</pallas_src>

<mosaic_0001>
module attributes {stable_mosaic.version = 11 : i64} {
  func.func @rp_encode_kernel(%arg0: i32, %arg1: i32, %arg2: memref<8x32xbf16, #tpu.memory_space<vmem>>, %arg3: memref<32x256xbf16, #tpu.memory_space<vmem>>, %arg4: memref<1x256xf32, #tpu.memory_space<vmem>>, %arg5: memref<8x256xbf16, #tpu.memory_space<vmem>>) attributes {dimension_semantics = [#tpu.dimension_semantics<parallel>, #tpu.dimension_semantics<parallel>], iteration_bounds = array<i64: 1, 1>, scalar_prefetch = 0 : i64, scratch_operands = 0 : i64, tpu.core_type = #tpu.core_type<tc>, window_params = [{transform_indices = @transform_0, window_bounds = array<i64: 8, 32>}, {transform_indices = @transform_1, window_bounds = array<i64: 32, 256>}, {transform_indices = @transform_2, window_bounds = array<i64: 1, 256>}, {transform_indices = @transform_3, window_bounds = array<i64: 8, 256>}]} {
    %c0 = arith.constant 0 : index
    %c0_0 = arith.constant 0 : index
    %0 = vector.load %arg2[%c0, %c0_0] : memref<8x32xbf16, #tpu.memory_space<vmem>>, vector<8x32xbf16>
    %c0_1 = arith.constant 0 : index
    %c0_2 = arith.constant 0 : index
    %1 = vector.load %arg3[%c0_1, %c0_2] : memref<32x256xbf16, #tpu.memory_space<vmem>>, vector<32x256xbf16>
    %cst = arith.constant dense<0.000000e+00> : vector<8x256xf32>
    %2 = tpu.matmul %0, %1, %cst {dimension_numbers = #tpu.dot_dimension_numbers<[1], [0], [0], [1], [0, 0, 1, 1], [], []>} : vector<8x32xbf16>, vector<32x256xbf16>, vector<8x256xf32> -> vector<8x256xf32>
    %c0_3 = arith.constant 0 : index
    %c0_4 = arith.constant 0 : index
    %3 = vector.load %arg4[%c0_3, %c0_4] : memref<1x256xf32, #tpu.memory_space<vmem>>, vector<1x256xf32>
    %4 = vector.broadcast %3 : vector<1x256xf32> to vector<8x256xf32>
    %5 = arith.addf %2, %4 : vector<8x256xf32>
    %6 = math.tanh %5 : vector<8x256xf32>
    %7 = arith.truncf %6 : vector<8x256xf32> to vector<8x256xbf16>
    %c0_5 = arith.constant 0 : index
    %c0_6 = arith.constant 0 : index
    %8 = vector.load %arg5[%c0_5, %c0_6] : memref<8x256xbf16, #tpu.memory_space<vmem>>, vector<8x256xbf16>
    tpu.vector_store %arg5[%c0_5, %c0_6], %7 {strides = array<i32>} : memref<8x256xbf16, #tpu.memory_space<vmem>>, vector<8x256xbf16>,
    return
  }
  func.func @transform_0(%arg0: i32, %arg1: i32) -> (i32, i32) {
    %c0_i32 = arith.constant 0 : i32
    %c0_i32_0 = arith.constant 0 : i32
    return %arg1, %c0_i32 : i32, i32
  }
  func.func @transform_1(%arg0: i32, %arg1: i32) -> (i32, i32) {
    %c0_i32 = arith.constant 0 : i32
    %c0_i32_0 = arith.constant 0 : i32
    return %c0_i32, %arg0 : i32, i32
  }
  func.func @transform_2(%arg0: i32, %arg1: i32) -> (i32, i32) {
    %c0_i32 = arith.constant 0 : i32
    %c0_i32_0 = arith.constant 0 : i32
    return %c0_i32, %arg0 : i32, i32
  }
  func.func @transform_3(%arg0: i32, %arg1: i32) -> (i32, i32) {
    %c0_i32 = arith.constant 0 : i32
    return %arg1, %arg0 : i32, i32
  }
}

</mosaic_0001>

<llo_original>
// kernel: tpu_custom_call.1
$region0: #{tpu_custom_call.1}
  #allocation0 [shape = 'u32[]', space=smem, size = 0x4, offset = 0x4, fixed_abs, tag = 'smem constant byte address 0x4 - core index']
  #allocation1 [shape = 'u32[144,128]{1,0:T(1,128)}', space=vmem, size = 0x12000, scoped, tag = 'internal scratch']
  %s0 = inlined_call_operand.hbm [shape: bf16[8,32], index: 0, kind: input, shape index: {}]
  %s1 = inlined_call_operand.hbm [shape: bf16[32,256], index: 1, kind: input, shape index: {}]
  %s2 = inlined_call_operand.vmem [shape: f32[1,256], index: 2, kind: input, shape index: {}]
  %s3 = inlined_call_operand.hbm [shape: bf16[8,256], index: 3, kind: output, shape index: {}]
  %s4 = sld [smem:[#allocation0]]
  $region30: #{tpu_custom_call.1} parent=0
    _
  %s6 = ssub.s32 1, %s4
  %s7 = scalar_select 0, %s6, %s4
  $region1: #{tpu_custom_call.1} parent=0
    #allocation2 [shape = 'u8[2048]{0}', space=vmem, size = 0x800, scoped, tag = 'input window, operand 0, single buffered']
    #allocation3 [shape = 's32[1]{0}', space=sflag, size = 0x4, scoped, tag = 'scoped memory for tpu_custom_call.1']
    #allocation4 [shape = 's32[1]{0}', space=sflag, size = 0x4, scoped, tag = 'scoped memory for tpu_custom_call.1']
    #allocation5 [shape = 'u8[16384]{0}', space=vmem, size = 0x4000, scoped, tag = 'input window, operand 1, single buffered']
    #allocation6 [shape = 's32[1]{0}', space=sflag, size = 0x4, scoped, tag = 'scoped memory for tpu_custom_call.1']
    #allocation7 [shape = 'u8[4096]{0}', space=vmem, size = 0x1000, scoped, tag = 'output window, operand 0, single buffered']
    %8 = vsyncpa [#allocation3], 0
    %9 = vsyncpa [#allocation6], 0
    %10 = vsyncpa [#allocation4], 0
    // Predicated region
    $region2: #{tpu_custom_call.1} parent=1 // pred_check
      _
    $region3: #{tpu_custom_call.1} parent=1 // pred_check_branch
      %12 = sbr.rel (0) target = $region5
    $region4: #{tpu_custom_call.1} parent=1 // pred_region
      %s14 = ssub.s32 64, 64
      %15 = vsyncadd [#allocation3], %s14
      %s17 = sshll.u32 [#allocation2], 4
      %s18 = int_to_ptr.vmem [resolvable:$true] %s17
      %20 = dma.hbm_to_vmem [thread:$0]  %s0, 64, %s18, [#allocation3]
    $region5: #{tpu_custom_call.1} parent=1 // pred_fallthru
      _
    // Predicated region
    $region6: #{tpu_custom_call.1} parent=1 // pred_check
      _
    $region7: #{tpu_custom_call.1} parent=1 // pred_check_branch
      %22 = sbr.rel (0) target = $region9
    $region8: #{tpu_custom_call.1} parent=1 // pred_region
      %s24 = ssub.s32 512, 512
      %25 = vsyncadd [#allocation6], %s24
      %s26 = sshll.u32 [#allocation5], 4
      %s27 = int_to_ptr.vmem [resolvable:$true] %s26
      %32 = dma.hbm_to_vmem [thread:$0]  %s1, 512, %s27, [#allocation6], 128, 128, 8
    $region9: #{tpu_custom_call.1} parent=1 // pred_fallthru
      _
    // Predicated region
    $region10: #{tpu_custom_call.1} parent=1 // pred_check
      _
    $region11: #{tpu_custom_call.1} parent=1 // pred_check_branch
      %34 = sbr.rel (0) target = $region13
    $region12: #{tpu_custom_call.1} parent=1 // pred_region
      _
    $region13: #{tpu_custom_call.1} parent=1 // pred_fallthru
      _
    // Predicated region
    $region14: #{tpu_custom_call.1} parent=1 // pred_check
      _
    $region15: #{tpu_custom_call.1} parent=1 // pred_check_branch
      %36 = sbr.rel (0) target = $region17
    $region16: #{tpu_custom_call.1} parent=1 // pred_region
      %37 = dma.done [#allocation3], 64
    $region17: #{tpu_custom_call.1} parent=1 // pred_fallthru
      _
    // Predicated region
    $region18: #{tpu_custom_call.1} parent=1 // pred_check
      _
    $region19: #{tpu_custom_call.1} parent=1 // pred_check_branch
      %39 = sbr.rel (0) target = $region21
    $region20: #{tpu_custom_call.1} parent=1 // pred_region
      %40 = dma.done [#allocation6], 512
    $region21: #{tpu_custom_call.1} parent=1 // pred_fallthru
      _
    %v42 = vld [vmem:[#allocation2] sm:$0xf]
    %v43 = vld [vmem:[#allocation5] sm:$0xff]
    %v44 = vld [vmem:[#allocation5 + $0x8] sm:$0xff]
    %v45 = vld [vmem:[#allocation5 + $0x10] sm:$0xff]
    %v46 = vld [vmem:[#allocation5 + $0x18] sm:$0xff]
    %v47 = vld [vmem:[%s2] sm:$0x3]
    %v49 = vlaneseq
    %v50 = vshrl.u32 %v49, 7
    %v51 = vsub.s32 0, %v50
    %v52 = vrot.slane %v47, %v51
    %v53 = vlaneseq
    %v54 = vshrl.u32 %v53, 7
    %v55 = vsub.s32 1, %v54
    %v56 = vrot.slane %v47, %v55
    %v63 = vunpack.c.l.b16 %v43
    %v64 = vunpack.c.h.b16 %v43
    %v65 = vunpack.c.l.b16 %v44
    %v66 = vunpack.c.h.b16 %v44
    %v67 = vunpack.c.l.b16 %v45
    %v68 = vunpack.c.h.b16 %v45
    %v69 = vunpack.c.l.b16 %v46
    %v70 = vunpack.c.h.b16 %v46
    %v71 = vpack.c.b16 %v65, %v63
    %v72 = vpack.c.b16 %v66, %v64
    %v73 = vpack.c.b16 %v69, %v67
    %v74 = vpack.c.b16 %v70, %v68
    %vm79 = vcmask 261120
    %v81 = vsel %vm79, %v42, 0
    %83 = vmatprep.subr.bf16.mxu0 0
    %84 = vmatpush1.bf16.msra.mxu0 0
    %85 = vmatprep.subr.bf16.mxu0 0
    %86 = vmatpush1.bf16.msra.mxu0 0
    %87 = vmatprep.subr.bf16.mxu0 0
    %88 = vmatpush1.bf16.msra.mxu0 0
    %89 = vmatprep.subr.bf16.mxu0 0
    %90 = vmatpush1.bf16.msra.mxu0 0
    %91 = vmatprep.subr.bf16.mxu0 0
    %92 = vmatpush1.bf16.msra.mxu0 0
    %93 = vmatprep.subr.bf16.mxu0 0
    %94 = vmatpush1.bf16.msra.mxu0 0
    %95 = vmatprep.subr.bf16.mxu0 %v74
    %96 = vmatpush1.bf16.msra.mxu0 %v73
    %97 = vmatprep.subr.bf16.mxu0 %v72
    %98 = vmatpush1.bf16.msra.mxu0 %v71
    %99 = vmatprep.subr.bf16.mxu0 0
    %100 = vmatpush2.bf16.msra.mxu0 0
    %101 = vmatprep.subr.bf16.mxu0 0
    %102 = vmatpush2.bf16.msra.mxu0 0
    %103 = vmatprep.subr.bf16.mxu0 0
    %104 = vmatpush2.bf16.msra.mxu0 0
    %105 = vmatprep.subr.bf16.mxu0 0
    %106 = vmatpush2.bf16.msra.mxu0 0
    %107 = vmatprep.subr.bf16.mxu0 0
    %108 = vmatpush2.bf16.msra.mxu0 0
    %109 = vmatprep.subr.bf16.mxu0 0
    %110 = vmatpush2.bf16.msra.mxu0 0
    %111 = vmatprep.subr.bf16.mxu0 0
    %112 = vmatpush2.bf16.msra.mxu0 0
    %113 = vmatprep.subr.bf16.mxu0 0
    %114 = vmatpush2.bf16.msra.mxu0 0
    %115 = vmatprep.mubr.bf16.mxu0 0
    %116 = vmatmul.mubr.bf16.gmra.mxu0 %v81
    %v117 = vpop.f32.mrf.mxu0
    %v118 = vadd.f32 %v52, %v117
    %v119 = vpop.f32.mrf.mxu0
    %v120 = vadd.f32 %v56, %v119
    %v121 = vpop.f32.mrf.mxu0
    %v122 = vpop.f32.mrf.mxu0
    %123 = vdwg.mxu0
    %v124 = vtanh.pop %v118
    %v125 = vtanh.pop %v120
    %v126 = vpack.c.bf16 %v124, %v124
    %v127 = vpack.c.bf16 %v125, %v125
    %v130 = vunpack.c.l.b16 %v126
    %v131 = vunpack.c.l.b16 %v127
    %v132 = vpack.c.b16 %v131, %v130
    %134 = vst [vmem:[#allocation7] sm:$0xff] %v132
    // Predicated region
    $region22: #{tpu_custom_call.1} parent=1 // pred_check
      _
    $region23: #{tpu_custom_call.1} parent=1 // pred_check_branch
      %136 = sbr.rel (0) target = $region25
    $region24: #{tpu_custom_call.1} parent=1 // pred_region
      %s138 = ssub.s32 128, 128
      %139 = vsyncadd [#allocation4], %s138
      %s141 = sshll.u32 [#allocation7], 4
      %s142 = int_to_ptr.vmem [resolvable:$true] %s141
      %144 = dma.vmem_to_hbm [thread:$0]  %s142, 128, %s3, [#allocation4]
    $region25: #{tpu_custom_call.1} parent=1 // pred_fallthru
      _
    // Predicated region
    $region26: #{tpu_custom_call.1} parent=1 // pred_check
      _
    $region27: #{tpu_custom_call.1} parent=1 // pred_check_branch
      %146 = sbr.rel (0) target = $region29
    $region28: #{tpu_custom_call.1} parent=1 // pred_region
      %147 = dma.done [#allocation4], 128
    $region29: #{tpu_custom_call.1} parent=1 // pred_fallthru
      _
    %148 = vsyncpa [#allocation3], 1
    %149 = vsyncpa [#allocation6], 1
    %150 = vsyncpa [#allocation4], 1

</llo_original>
